<compile_context>
chip_gen: v7x
topology: tpu7x:2x2x1
jax: 0.10.0
libtpu: 0.0.40
codegen_flags: <defaults>
</compile_context>

<pallas_src>
import math
import jax
import jax.numpy as jnp
from jax.experimental import pallas as pl
from jax.experimental.pallas import tpu as pltpu


_TARGET_TILE_BYTES = 2 * 1024 * 1024   # per x / out tile: roofline plateau, v7x-VMEM-safe
_MIN_TILE_BYTES = 1 * 1024 * 1024      # never shrink below this when evening the step count
_VMEM_LIMIT_BYTES = 32 * 1024 * 1024   # valid scoped limit on v5e / v6e / v7x


def make_positional_encoding(d_model: int, max_len: int = 5000,
                             dtype=jnp.float32) -> jnp.ndarray:
    """Sin/cos table identical to the PyTorch __init__, shape (max_len, 1, d_model),
    pre-cast ONCE to the compute dtype.

    Note: PyTorch keeps this buffer f32 and lets the add promote; pre-casting to
    bf16 here trades a tiny numeric drift for halved pe HBM traffic.  Use the
    default dtype=float32 for exact parity with PyTorch."""
    position = jnp.arange(0, max_len, dtype=jnp.float32)[:, None]            # (max_len, 1)
    div_term = jnp.exp(
        jnp.arange(0, d_model, 2, dtype=jnp.float32) * -(math.log(10000.0) / d_model)
    )                                                                         # (ceil(d/2),)
    angles = position * div_term                                              # (max_len, ceil(d/2))
    pe = jnp.zeros((max_len, d_model), dtype=jnp.float32)
    pe = pe.at[:, 0::2].set(jnp.sin(angles))
    pe = pe.at[:, 1::2].set(jnp.cos(angles)[:, : d_model // 2])
    # unsqueeze(0).transpose(0, 1) -> (max_len, 1, d_model)
    return pe[:, None, :].astype(dtype)


def _sublane_rows(dtype) -> int:
    # Native sublane tile height per dtype: (8,128) f32, (16,128) bf16, (32,128) int8/fp8.
    return max(8, 32 // jnp.dtype(dtype).itemsize)


def _choose_seq_tile(S: int, row_bytes: int, sub: int) -> int:
    """Sequence-tile size: as large as the ~2 MiB byte budget allows (2x-buffered
    x+pe+out stays far under scoped VMEM on every generation), sublane-aligned
    for the dtype, and — when there are multiple grid steps — nudged so the step
    count is even (balances v7x's two TensorCores)."""
    if S <= sub:
        return S
    ts = max(sub, _TARGET_TILE_BYTES // max(row_bytes, 1))
    ts = (ts // sub) * sub
    if ts >= S:
        return S
    steps = -(-S // ts)                                   # cdiv
    if steps % 2 == 1:
        ts_even = -(-S // (steps + 1))
        ts_even = -(-ts_even // sub) * sub                # sublane-align (round up)
        if ts_even * row_bytes >= _MIN_TILE_BYTES and (-(-S // ts_even)) % 2 == 0:
            ts = ts_even
    return ts


# ---------------------------------------------------------------------------
# Kernels
# ---------------------------------------------------------------------------

def _pe_add_kernel_3d(x_ref, pe_ref, o_ref):
    # x_ref / o_ref: (ts, B, D) tiles; pe_ref: (ts, 1, D) -> broadcasts over batch.
    o_ref[...] = x_ref[...] + pe_ref[...]


def _make_pe_add_kernel_2d(batch: int, d_model: int):
    # x_ref / o_ref: (ts, B*D) lane-dense tiles; pe_ref: (ts, D) (unit batch dim
    # squeezed by the BlockSpec).  Static, 128-lane-aligned slices keep every
    # store an unmasked dense vst.  pe is loaded inside the loop (VMEM reloads
    # are free in an HBM-bound kernel) rather than hoisted across the unroll.
    def kernel(x_ref, pe_ref, o_ref):
        for b in range(batch):                            # static unroll; B < 8 here
            sl = slice(b * d_model, (b + 1) * d_model)
            o_ref[:, sl] = x_ref[:, sl] + pe_ref[...]
    return kernel


# ---------------------------------------------------------------------------
# Wrapper
# ---------------------------------------------------------------------------

def positional_encoding_forward(x: jnp.ndarray, pe: jnp.ndarray) -> jnp.ndarray:
    """x: (S, B, D); pe: (max_len, 1, D) table from make_positional_encoding.
    Returns x + pe[:S] (broadcast over batch)."""
    S, B, D = x.shape
    assert pe.shape[0] >= S and pe.shape[2] == D, "pe table does not cover x"
    if pe.dtype != x.dtype:
        # Fallback only — pre-cast at init (make_positional_encoding(dtype=...))
        # to avoid this extra pass over the table.
        pe = pe.astype(x.dtype)

    itemsize = jnp.dtype(x.dtype).itemsize
    sub = _sublane_rows(x.dtype)
    ts = _choose_seq_tile(S, B * D * itemsize, sub)
    grid = (pl.cdiv(S, ts),)
    cparams = pltpu.CompilerParams(
        dimension_semantics=("parallel",),     # seq steps shard across v7x's 2 TCs
        vmem_limit_bytes=_VMEM_LIMIT_BYTES,
    )

    if D % 128 == 0 and B < 8:
        # Lane-dense path for small batch: collapse (B, D) -> B*D (free,
        # contiguous reshape) so stores are full-lane instead of B-of-8-sublane
        # masked stores.  pe is windowed straight out of the full table.
        x2 = x.reshape(S, B * D)
        out2 = pl.pallas_call(
            _make_pe_add_kernel_2d(B, D),
            out_shape=jax.ShapeDtypeStruct((S, B * D), x.dtype),
            grid_spec=pl.GridSpec(
                grid=grid,
                in_specs=[
                    pl.BlockSpec((ts, B * D), lambda i: (i, 0)),
                    # Full (max_len, 1, D) table; the grid only touches the
                    # first ceil(S/ts) row-blocks; unit batch dim is squeezed.
                    pl.BlockSpec((ts, None, D), lambda i: (i, 0, 0)),
                ],
                out_specs=pl.BlockSpec((ts, B * D), lambda i: (i, 0)),
            ),
            compiler_params=cparams,
        )(x2, pe)
        return out2.reshape(S, B, D)

    # General path: 3-D blocks; trailing (B, D) equal the full extents so the
    # BlockSpec tiling is legal for any B / D (and already (8,128)-dense when
    # B % 8 == 0 and D % 128 == 0).
    return pl.pallas_call(
        _pe_add_kernel_3d,
        out_shape=jax.ShapeDtypeStruct((S, B, D), x.dtype),
        grid_spec=pl.GridSpec(
            grid=grid,
            in_specs=[
                pl.BlockSpec((ts, B, D), lambda i: (i, 0, 0)),
                pl.BlockSpec((ts, 1, D), lambda i: (i, 0, 0)),
            ],
            out_specs=pl.BlockSpec((ts, B, D), lambda i: (i, 0, 0)),
        ),
        compiler_params=cparams,
    )(x, pe)


# ---------------------------------------------------------------------------
# Self-test
# ---------------------------------------------------------------------------

if __name__ == "__main__":
    key = jax.random.PRNGKey(0)
    max_len = 2048

    # (S, B, D, dtype): toy shape from the module spec plus cases covering the
    # lane-dense 2-D path, the general 3-D path, multi-step grids with partial
    # last tiles, the even-step nudge, and a packed dtype.
    cases = [
        (8,    2, 32,   jnp.float32),   # toy shape -> 3-D path, single step
        (100,  2, 32,   jnp.float32),   # 3-D path, odd S, single step
        (16,   2, 128,  jnp.float32),   # 2-D lane-dense path, single step
        (1000, 8, 128,  jnp.float32),   # 3-D path, multi-step + partial last tile
        (1100, 2, 1024, jnp.float32),   # 2-D path, even-step nudge + partial tile
        (300,  2, 128,  jnp.bfloat16),  # packed dtype, 16-row sublane alignment
    ]

    for idx, (S, B, D, dtype) in enumerate(cases):
        key, subkey = jax.random.split(key)
        x = jax.random.normal(subkey, (S, B, D), dtype=jnp.float32).astype(dtype)
        pe = make_positional_encoding(D, max_len=max_len, dtype=dtype)

        out = jax.block_until_ready(positional_encoding_forward(x, pe))

        ref = x + pe[:S]                                   # plain-JAX reference
        assert out.shape == (S, B, D), f"shape mismatch in case {idx}"
        atol = 1e-6 if dtype == jnp.float32 else 2e-2
        assert jnp.allclose(out.astype(jnp.float32), ref.astype(jnp.float32),
                            atol=atol), f"mismatch vs reference in case {idx}"

    print("KERNEL_OK")
</pallas_src>

<mosaic_0001>
module attributes {stable_mosaic.version = 11 : i64} {
  func.func @_pe_add_kernel_3d(%arg0: i32, %arg1: memref<8x2x32xf32, #tpu.memory_space<vmem>>, %arg2: memref<8x1x32xf32, #tpu.memory_space<vmem>>, %arg3: memref<8x2x32xf32, #tpu.memory_space<vmem>>) attributes {dimension_semantics = [#tpu.dimension_semantics<parallel>], iteration_bounds = array<i64: 1>, scalar_prefetch = 0 : i64, scratch_operands = 0 : i64, tpu.core_type = #tpu.core_type<tc>, window_params = [{transform_indices = @transform_0, window_bounds = array<i64: 8, 2, 32>}, {transform_indices = @transform_1, window_bounds = array<i64: 8, 1, 32>}, {transform_indices = @transform_2, window_bounds = array<i64: 8, 2, 32>}]} {
    %c0 = arith.constant 0 : index
    %c0_0 = arith.constant 0 : index
    %c0_1 = arith.constant 0 : index
    %0 = vector.load %arg1[%c0, %c0_0, %c0_1] : memref<8x2x32xf32, #tpu.memory_space<vmem>>, vector<8x2x32xf32>
    %c0_2 = arith.constant 0 : index
    %c0_3 = arith.constant 0 : index
    %c0_4 = arith.constant 0 : index
    %1 = vector.load %arg2[%c0_2, %c0_3, %c0_4] : memref<8x1x32xf32, #tpu.memory_space<vmem>>, vector<8x1x32xf32>
    %2 = vector.broadcast %1 : vector<8x1x32xf32> to vector<8x2x32xf32>
    %3 = arith.addf %0, %2 : vector<8x2x32xf32>
    %c0_5 = arith.constant 0 : index
    %c0_6 = arith.constant 0 : index
    %c0_7 = arith.constant 0 : index
    %4 = vector.load %arg3[%c0_5, %c0_6, %c0_7] : memref<8x2x32xf32, #tpu.memory_space<vmem>>, vector<8x2x32xf32>
    tpu.vector_store %arg3[%c0_5, %c0_6, %c0_7], %3 {strides = array<i32>} : memref<8x2x32xf32, #tpu.memory_space<vmem>>, vector<8x2x32xf32>,
    return
  }
  func.func @transform_0(%arg0: i32) -> (i32, i32, i32) {
    %c0_i32 = arith.constant 0 : i32
    %c0_i32_0 = arith.constant 0 : i32
    %c0_i32_1 = arith.constant 0 : i32
    return %arg0, %c0_i32, %c0_i32_0 : i32, i32, i32
  }
  func.func @transform_1(%arg0: i32) -> (i32, i32, i32) {
    %c0_i32 = arith.constant 0 : i32
    %c0_i32_0 = arith.constant 0 : i32
    %c0_i32_1 = arith.constant 0 : i32
    return %arg0, %c0_i32, %c0_i32_0 : i32, i32, i32
  }
  func.func @transform_2(%arg0: i32) -> (i32, i32, i32) {
    %c0_i32 = arith.constant 0 : i32
    %c0_i32_0 = arith.constant 0 : i32
    %c0_i32_1 = arith.constant 0 : i32
    return %arg0, %c0_i32, %c0_i32_0 : i32, i32, i32
  }
}

</mosaic_0001>

<llo_original>
// kernel: tpu_custom_call.1
$region0: #{tpu_custom_call.1}
  #allocation0 [shape = 'u32[]', space=smem, size = 0x4, offset = 0x4, fixed_abs, tag = 'smem constant byte address 0x4 - core index']
  #allocation1 [shape = 'u32[144,128]{1,0:T(1,128)}', space=vmem, size = 0x12000, scoped, tag = 'internal scratch']
  %s0 = inlined_call_operand.vmem [shape: f32[8,2,32], index: 0, kind: input, shape index: {}]
  %s1 = inlined_call_operand.vmem [shape: f32[2048,1,32], index: 1, kind: input, shape index: {}]
  %s2 = inlined_call_operand.hbm [shape: f32[8,2,32], index: 2, kind: output, shape index: {}]
  %s3 = sld [smem:[#allocation0]]
  $region18: #{tpu_custom_call.1} parent=0
    _
  %s5 = ssub.s32 1, %s3
  %s6 = scalar_select 0, %s5, %s3
  $region1: #{tpu_custom_call.1} parent=0
    #allocation2 [shape = 'u8[8192]{0}', space=vmem, size = 0x2000, scoped, tag = 'output window, operand 0, single buffered']
    #allocation3 [shape = 's32[1]{0}', space=sflag, size = 0x4, scoped, tag = 'scoped memory for tpu_custom_call.1']
    %7 = vsyncpa [#allocation3], 0
    // Predicated region
    $region2: #{tpu_custom_call.1} parent=1 // pred_check
      _
    $region3: #{tpu_custom_call.1} parent=1 // pred_check_branch
      %9 = sbr.rel (0) target = $region5
    $region4: #{tpu_custom_call.1} parent=1 // pred_region
      _
    $region5: #{tpu_custom_call.1} parent=1 // pred_fallthru
      _
    // Predicated region
    $region6: #{tpu_custom_call.1} parent=1 // pred_check
      _
    $region7: #{tpu_custom_call.1} parent=1 // pred_check_branch
      %11 = sbr.rel (0) target = $region9
    $region8: #{tpu_custom_call.1} parent=1 // pred_region
      _
    $region9: #{tpu_custom_call.1} parent=1 // pred_fallthru
      _
    %v12 = vld [vmem:[%s0] sm:$0x3]
    %v13 = vld [vmem:[%s0 + $0x2] sm:$0x3]
    %v14 = vld [vmem:[%s0 + $0x4] sm:$0x3]
    %v15 = vld [vmem:[%s0 + $0x6] sm:$0x3]
    %v16 = vld [vmem:[%s0 + $0x8] sm:$0x3]
    %v17 = vld [vmem:[%s0 + $0xa] sm:$0x3]
    %v18 = vld [vmem:[%s0 + $0xc] sm:$0x3]
    %v19 = vld [vmem:[%s0 + $0xe] sm:$0x3]
    %v20 = vld [vmem:[%s1] sm:$0x1]
    %v21 = vld [vmem:[%s1 + $0x1] sm:$0x1]
    %v22 = vld [vmem:[%s1 + $0x2] sm:$0x1]
    %v23 = vld [vmem:[%s1 + $0x3] sm:$0x1]
    %v24 = vld [vmem:[%s1 + $0x4] sm:$0x1]
    %v25 = vld [vmem:[%s1 + $0x5] sm:$0x1]
    %v26 = vld [vmem:[%s1 + $0x6] sm:$0x1]
    %v27 = vld [vmem:[%s1 + $0x7] sm:$0x1]
    %v36 = vlaneseq
    %v37 = vshrl.u32 %v36, 7
    %v38 = vsub.s32 0, %v37
    %v39 = vrot.slane %v20, %v38
    %v40 = vlaneseq
    %v41 = vshrl.u32 %v40, 7
    %v42 = vsub.s32 0, %v41
    %v43 = vrot.slane %v21, %v42
    %v44 = vlaneseq
    %v45 = vshrl.u32 %v44, 7
    %v46 = vsub.s32 0, %v45
    %v47 = vrot.slane %v22, %v46
    %v48 = vlaneseq
    %v49 = vshrl.u32 %v48, 7
    %v50 = vsub.s32 0, %v49
    %v51 = vrot.slane %v23, %v50
    %v52 = vlaneseq
    %v53 = vshrl.u32 %v52, 7
    %v54 = vsub.s32 0, %v53
    %v55 = vrot.slane %v24, %v54
    %v56 = vlaneseq
    %v57 = vshrl.u32 %v56, 7
    %v58 = vsub.s32 0, %v57
    %v59 = vrot.slane %v25, %v58
    %v60 = vlaneseq
    %v61 = vshrl.u32 %v60, 7
    %v62 = vsub.s32 0, %v61
    %v63 = vrot.slane %v26, %v62
    %v64 = vlaneseq
    %v65 = vshrl.u32 %v64, 7
    %v66 = vsub.s32 0, %v65
    %v67 = vrot.slane %v27, %v66
    %v76 = vadd.f32 %v12, %v39
    %v77 = vadd.f32 %v13, %v43
    %v78 = vadd.f32 %v14, %v47
    %v79 = vadd.f32 %v15, %v51
    %v80 = vadd.f32 %v16, %v55
    %v81 = vadd.f32 %v17, %v59
    %v82 = vadd.f32 %v18, %v63
    %v83 = vadd.f32 %v19, %v67
    %vm84 = vcmask 254976
    %85 = vst.msk [vmem:[#allocation2] sm:$0x3] %vm84, %v76
    %86 = vst.msk [vmem:[#allocation2 + $0x2] sm:$0x3] %vm84, %v77
    %87 = vst.msk [vmem:[#allocation2 + $0x4] sm:$0x3] %vm84, %v78
    %88 = vst.msk [vmem:[#allocation2 + $0x6] sm:$0x3] %vm84, %v79
    %89 = vst.msk [vmem:[#allocation2 + $0x8] sm:$0x3] %vm84, %v80
    %90 = vst.msk [vmem:[#allocation2 + $0xa] sm:$0x3] %vm84, %v81
    %91 = vst.msk [vmem:[#allocation2 + $0xc] sm:$0x3] %vm84, %v82
    %92 = vst.msk [vmem:[#allocation2 + $0xe] sm:$0x3] %vm84, %v83
    // Predicated region
    $region10: #{tpu_custom_call.1} parent=1 // pred_check
      _
    $region11: #{tpu_custom_call.1} parent=1 // pred_check_branch
      %94 = sbr.rel (0) target = $region13
    $region12: #{tpu_custom_call.1} parent=1 // pred_region
      %s96 = ssub.s32 256, 256
      %97 = vsyncadd [#allocation3], %s96
      %s98 = sshll.u32 [#allocation2], 4
      %s99 = int_to_ptr.vmem [resolvable:$true] %s98
      %104 = dma.vmem_to_hbm [thread:$0]  %s99, 256, %s2, [#allocation3], 32, 32, 2
    $region13: #{tpu_custom_call.1} parent=1 // pred_fallthru
      _
    // Predicated region
    $region14: #{tpu_custom_call.1} parent=1 // pred_check
      _
    $region15: #{tpu_custom_call.1} parent=1 // pred_check_branch
      %106 = sbr.rel (0) target = $region17
    $region16: #{tpu_custom_call.1} parent=1 // pred_region
      %107 = dma.done [#allocation3], 256
    $region17: #{tpu_custom_call.1} parent=1 // pred_fallthru
      _
    %108 = vsyncpa [#allocation3], 1

</llo_original>
